<compile_context>
chip_gen: v5e
topology: v5e:2x2
jax: 0.10.0
libtpu: 0.0.40
codegen_flags: <defaults>
</compile_context>

<pallas_src>
import functools
import math

import jax
import jax.numpy as jnp
from jax import lax
from jax.experimental import pallas as pl
from jax.experimental.pallas import tpu as pltpu

LOG2 = math.log(2.0)
AGENTS = 5   # fenchel_dual_loss hard-codes 5x5 block pooling -> agent dim must be 5
HIDDEN = 32


def _round_up(x, m):
    return (x + m - 1) // m * m


def _softplus(x):
    # numerically stable softplus
    return jnp.maximum(x, 0.0) + jnp.log1p(jnp.exp(-jnp.abs(x)))


def _leaky_relu(x, slope=0.01):
    return jnp.maximum(x, slope * x)


def _embed_pool_kernel(xsT_ref, xa_ref, w1T_ref, b1_ref, w2_ref, b2_ref,
                       em1T_ref, em1_ref, em2_ref, s1_ref, *, n_valid):
    """Embeddings + 5-agent pooling (linear in N).

    xsT_ref : (S, 5*Np)   state, transposed, agent-major along lanes (column a*Np + i).
    xa_ref  : (5*Np, C)   joint_action, agent-major along rows (row a*Np + i).
    Outputs:
      em1T_ref : (32, Np)  pooled em1, transposed (lane-dense); padded columns zeroed.
      em1_ref  : (Np, 32)  same, row-major (for the per-row diagonal in kernel 2).
      em2_ref  : (Np, 32)  pooled em2; padded rows zeroed.
      s1_ref   : (1, 32)   sum_j em1_sum[j, :] (for O(N*32) row sums of u).
    """
    n_pad = em1T_ref.shape[1]

    # Lane-dense transposed em1 on the MXU with f32 accumulation: (32, 5*Np).
    em1T = _leaky_relu(
        jnp.dot(w1T_ref[...], xsT_ref[...], preferred_element_type=jnp.float32)
        + b1_ref[...])
    em2 = _leaky_relu(
        jnp.dot(xa_ref[...], w2_ref[...], preferred_element_type=jnp.float32)
        + b2_ref[...])

    # 5x5 block-mean pooling fused into the embeddings (bilinearity): pool over agents.
    em1T_sum = em1T[:, 0:n_pad]
    em2_sum = em2[0:n_pad, :]
    for a in range(1, AGENTS):
        em1T_sum = em1T_sum + em1T[:, a * n_pad:(a + 1) * n_pad]
        em2_sum = em2_sum + em2[a * n_pad:(a + 1) * n_pad, :]

    # Zero the padded batch entries so they contribute exactly 0 to u, and hence
    # exactly 0 to every off-diagonal e_neg row sum (softplus(0) + 0 - log2 == 0).
    if n_valid < n_pad:
        col = lax.broadcasted_iota(jnp.int32, (HIDDEN, n_pad), 1)
        em1T_sum = jnp.where(col < n_valid, em1T_sum, 0.0)
        row = lax.broadcasted_iota(jnp.int32, (n_pad, HIDDEN), 0)
        em2_sum = jnp.where(row < n_valid, em2_sum, 0.0)

    em1_row = jnp.transpose(em1T_sum)                      # (Np, 32) small one-time transpose

    em1T_ref[...] = em1T_sum
    em1_ref[...] = em1_row
    em2_ref[...] = em2_sum
    s1_ref[...] = jnp.sum(em1_row, axis=0, keepdims=True)  # (1, 32)


def _jsd_loss_kernel(em2_ref, em1_ref, em1T_ref, s1_ref, out_ref, *, n_valid):
    """One (TM, Np) row block of the JSD fenchel-dual loss.

    Only sp = softplus(-u) is quadratic; the diagonal and the u row sums are O(TM*32).
    """
    n_pad = em1T_ref.shape[1]
    inv25 = 1.0 / float(AGENTS * AGENTS)

    em2_b = em2_ref[...]                                     # (TM, 32)
    em1_b = em1_ref[...]                                     # (TM, 32)

    # u row block: natural (M,K)x(K,N) MXU matmul against the resident em1_sumT.
    u = jnp.dot(em2_b, em1T_ref[...],
                preferred_element_type=jnp.float32) * inv25  # (TM, Np)
    sp = _softplus(-u)
    row_sum_sp = jnp.sum(sp, axis=1)                         # (TM,) - the only NxN reduce

    # O(TM*32) analytic pieces.
    row_sum_u = jnp.sum(em2_b * s1_ref[...], axis=1) * inv25  # sum_j u[i, j]
    diag_u = jnp.sum(em2_b * em1_b, axis=1) * inv25           # u[i, i]
    diag_sp = _softplus(-diag_u)

    mi = LOG2 - diag_sp                                       # diag(E_pos)
    diag_e_neg = diag_sp + diag_u - LOG2
    # Padded columns contribute softplus(0) + 0 - log2 == 0, so summing over all
    # n_pad columns equals the sum over the n_valid real columns.
    row_e_neg = row_sum_sp + row_sum_u - float(n_pad) * LOG2
    denom = float(max(n_valid - 1, 1))  # reference divides by N-1 (undefined for N == 1)
    loss = (row_e_neg - diag_e_neg) / denom - mi

    # Row-wise writes (no concatenate temporary).
    out_ref[0:1, :] = loss[None, :]
    out_ref[1:2, :] = mi[None, :]


def new_mine_forward(state, joint_action, params):
    """state: (N, 5, S); joint_action: (N, 5, C); params = (w1, b1, w2, b2) with
    w1: (S, 32), w2: (C, 32) (pre-transposed nn.Linear weights). measure='JSD'."""
    # TODO(synk): only the default measure 'JSD' is implemented in-kernel.
    N, A, S = state.shape
    _, _, C = joint_action.shape
    assert A == AGENTS, "fenchel_dual_loss assumes agent_num == 5"
    w1, b1, w2, b2 = params

    # Pad the batch dim so agent slices are sublane-aligned and u / output tiles are
    # lane-dense; for large N tile rows of u at 128 (keeps VMEM bounded on v7x).
    if N <= 128:
        n_pad = max(8, _round_up(N, 8))
        tm = n_pad
    else:
        n_pad = _round_up(N, 128)
        tm = 128

    xs = jnp.transpose(state.astype(jnp.float32), (1, 0, 2))          # (A, N, S)
    xa = jnp.transpose(joint_action.astype(jnp.float32), (1, 0, 2))   # (A, N, C)
    if n_pad != N:
        pad = ((0, 0), (0, n_pad - N), (0, 0))
        xs = jnp.pad(xs, pad)
        xa = jnp.pad(xa, pad)
    xs_t = jnp.transpose(xs.reshape(A * n_pad, S))                    # (S, 5*Np)
    xa_f = xa.reshape(A * n_pad, C)                                   # (5*Np, C)

    vmem = pl.BlockSpec(memory_space=pltpu.MemorySpace.VMEM)
    f32 = jnp.float32

    # Kernel 1: embeddings + agent pooling (single shot; linear in N).
    em1t, em1, em2, s1 = pl.pallas_call(
        functools.partial(_embed_pool_kernel, n_valid=N),
        out_shape=(jax.ShapeDtypeStruct((HIDDEN, n_pad), f32),
                   jax.ShapeDtypeStruct((n_pad, HIDDEN), f32),
                   jax.ShapeDtypeStruct((n_pad, HIDDEN), f32),
                   jax.ShapeDtypeStruct((1, HIDDEN), f32)),
        in_specs=[vmem] * 6,
        out_specs=(vmem, vmem, vmem, vmem),
        compiler_params=pltpu.CompilerParams(
            vmem_limit_bytes=32 * 1024 * 1024),
    )(xs_t, xa_f, jnp.transpose(w1), b1.reshape(HIDDEN, 1), w2,
      b2.reshape(1, HIDDEN))

    # Kernel 2: quadratic part, gridded over row blocks of u (bounded VMEM;
    # "parallel" lets v7x's two TensorCores split the blocks).
    out = pl.pallas_call(
        functools.partial(_jsd_loss_kernel, n_valid=N),
        out_shape=jax.ShapeDtypeStruct((2, n_pad), f32),
        grid=(n_pad // tm,),
        in_specs=[
            pl.BlockSpec((tm, HIDDEN), lambda i: (i, 0)),      # em2_sum row block
            pl.BlockSpec((tm, HIDDEN), lambda i: (i, 0)),      # em1_sum row block (diag)
            pl.BlockSpec((HIDDEN, n_pad), lambda i: (0, 0)),   # em1_sumT, resident
            pl.BlockSpec((1, HIDDEN), lambda i: (0, 0)),       # s1, resident
        ],
        out_specs=pl.BlockSpec((2, tm), lambda i: (0, i)),
        compiler_params=pltpu.CompilerParams(
            dimension_semantics=("parallel",),
            vmem_limit_bytes=32 * 1024 * 1024),
    )(em2, em1, em1t, s1)

    return out[0, :N], out[1, :N]


def _reference(state, joint_action, params):
    w1, b1, w2, b2 = params
    N, A, S = state.shape
    em1 = jax.nn.leaky_relu(state.reshape(N * A, S) @ w1 + b1, 0.01)
    em2 = jax.nn.leaky_relu(
        joint_action.reshape(N * A, -1).astype(jnp.float32) @ w2 + b2, 0.01)
    u = em2 @ em1.T
    u_blk = u.reshape(N, A, N, A).mean(axis=(1, 3))
    sp = jnp.logaddexp(0.0, -u_blk)
    e_pos = LOG2 - sp
    e_neg = sp + u_blk - LOG2
    mask = jnp.eye(N)
    mi = (e_pos * mask).sum(1)
    loss = (e_neg * (1 - mask)).sum(1) / (N - 1) - mi
    return loss, mi


if __name__ == "__main__":
    key = jax.random.PRNGKey(0)
    N, state_size, com_a_size = 4, 16, 8

    k1, k2, k3, k4, k5, k6 = jax.random.split(key, 6)
    # nn.Linear(state_size, 32) / nn.Linear(com_a_size, 32), stored pre-transposed.
    w1 = (jax.random.uniform(k1, (state_size, HIDDEN), jnp.float32) - 0.5) * 0.2
    b1 = (jax.random.uniform(k2, (HIDDEN,), jnp.float32) - 0.5) * 0.2
    w2 = (jax.random.uniform(k3, (com_a_size, HIDDEN), jnp.float32) - 0.5) * 0.2
    b2 = (jax.random.uniform(k4, (HIDDEN,), jnp.float32) - 0.5) * 0.2
    params = (w1, b1, w2, b2)

    state = jax.random.normal(k5, (N, AGENTS, state_size), jnp.float32)
    joint_action = jax.random.normal(k6, (N, AGENTS, com_a_size), jnp.float32)

    loss, mi = new_mine_forward(state, joint_action, params)
    jax.block_until_ready((loss, mi))

    loss_ref, mi_ref = _reference(state, joint_action, params)
    assert jnp.allclose(loss, loss_ref, atol=1e-5, rtol=1e-4), (loss, loss_ref)
    assert jnp.allclose(mi, mi_ref, atol=1e-5, rtol=1e-4), (mi, mi_ref)

    print("KERNEL_OK")
</pallas_src>

<mosaic_0001>
module attributes {stable_mosaic.version = 11 : i64} {
  func.func @_embed_pool_kernel(%arg0: memref<16x40xf32, #tpu.memory_space<vmem>>, %arg1: memref<40x8xf32, #tpu.memory_space<vmem>>, %arg2: memref<32x16xf32, #tpu.memory_space<vmem>>, %arg3: memref<32x1xf32, #tpu.memory_space<vmem>>, %arg4: memref<8x32xf32, #tpu.memory_space<vmem>>, %arg5: memref<1x32xf32, #tpu.memory_space<vmem>>, %arg6: memref<32x8xf32, #tpu.memory_space<vmem>>, %arg7: memref<8x32xf32, #tpu.memory_space<vmem>>, %arg8: memref<8x32xf32, #tpu.memory_space<vmem>>, %arg9: memref<1x32xf32, #tpu.memory_space<vmem>>) attributes {dimension_semantics = [], scalar_prefetch = 0 : i64, scratch_operands = 0 : i64, tpu.core_type = #tpu.core_type<tc>} {
    %c0 = arith.constant 0 : index
    %c0_0 = arith.constant 0 : index
    %0 = vector.load %arg2[%c0, %c0_0] : memref<32x16xf32, #tpu.memory_space<vmem>>, vector<32x16xf32>
    %c0_1 = arith.constant 0 : index
    %c0_2 = arith.constant 0 : index
    %1 = vector.load %arg0[%c0_1, %c0_2] : memref<16x40xf32, #tpu.memory_space<vmem>>, vector<16x40xf32>
    %cst = arith.constant dense<0.000000e+00> : vector<32x40xf32>
    %2 = tpu.matmul %0, %1, %cst {dimension_numbers = #tpu.dot_dimension_numbers<[1], [0], [0], [1], [0, 0, 1, 1], [], []>} : vector<32x16xf32>, vector<16x40xf32>, vector<32x40xf32> -> vector<32x40xf32>
    %c0_3 = arith.constant 0 : index
    %c0_4 = arith.constant 0 : index
    %3 = vector.load %arg3[%c0_3, %c0_4] : memref<32x1xf32, #tpu.memory_space<vmem>>, vector<32x1xf32>
    %4 = vector.broadcast %3 : vector<32x1xf32> to vector<32x40xf32>
    %5 = arith.addf %2, %4 : vector<32x40xf32>
    %cst_5 = arith.constant 0.00999999977 : f32
    %6 = vector.broadcast %cst_5 : f32 to vector<32x40xf32>
    %7 = arith.mulf %6, %5 : vector<32x40xf32>
    %8 = arith.maximumf %5, %7 : vector<32x40xf32>
    %c0_6 = arith.constant 0 : index
    %c0_7 = arith.constant 0 : index
    %9 = vector.load %arg1[%c0_6, %c0_7] : memref<40x8xf32, #tpu.memory_space<vmem>>, vector<40x8xf32>
    %c0_8 = arith.constant 0 : index
    %c0_9 = arith.constant 0 : index
    %10 = vector.load %arg4[%c0_8, %c0_9] : memref<8x32xf32, #tpu.memory_space<vmem>>, vector<8x32xf32>
    %cst_10 = arith.constant dense<0.000000e+00> : vector<40x32xf32>
    %11 = tpu.matmul %9, %10, %cst_10 {dimension_numbers = #tpu.dot_dimension_numbers<[1], [0], [0], [1], [0, 0, 1, 1], [], []>} : vector<40x8xf32>, vector<8x32xf32>, vector<40x32xf32> -> vector<40x32xf32>
    %c0_11 = arith.constant 0 : index
    %c0_12 = arith.constant 0 : index
    %12 = vector.load %arg5[%c0_11, %c0_12] : memref<1x32xf32, #tpu.memory_space<vmem>>, vector<1x32xf32>
    %13 = vector.broadcast %12 : vector<1x32xf32> to vector<40x32xf32>
    %14 = arith.addf %11, %13 : vector<40x32xf32>
    %cst_13 = arith.constant 0.00999999977 : f32
    %15 = vector.broadcast %cst_13 : f32 to vector<40x32xf32>
    %16 = arith.mulf %15, %14 : vector<40x32xf32>
    %17 = arith.maximumf %14, %16 : vector<40x32xf32>
    %18 = vector.extract_strided_slice %8 {offsets = [0, 0], sizes = [32, 8], strides = [1, 1]} : vector<32x40xf32> to vector<32x8xf32>
    %19 = vector.extract_strided_slice %17 {offsets = [0, 0], sizes = [8, 32], strides = [1, 1]} : vector<40x32xf32> to vector<8x32xf32>
    %20 = vector.extract_strided_slice %8 {offsets = [0, 8], sizes = [32, 8], strides = [1, 1]} : vector<32x40xf32> to vector<32x8xf32>
    %21 = arith.addf %18, %20 : vector<32x8xf32>
    %22 = vector.extract_strided_slice %17 {offsets = [8, 0], sizes = [8, 32], strides = [1, 1]} : vector<40x32xf32> to vector<8x32xf32>
    %23 = arith.addf %19, %22 : vector<8x32xf32>
    %24 = vector.extract_strided_slice %8 {offsets = [0, 16], sizes = [32, 8], strides = [1, 1]} : vector<32x40xf32> to vector<32x8xf32>
    %25 = arith.addf %21, %24 : vector<32x8xf32>
    %26 = vector.extract_strided_slice %17 {offsets = [16, 0], sizes = [8, 32], strides = [1, 1]} : vector<40x32xf32> to vector<8x32xf32>
    %27 = arith.addf %23, %26 : vector<8x32xf32>
    %28 = vector.extract_strided_slice %8 {offsets = [0, 24], sizes = [32, 8], strides = [1, 1]} : vector<32x40xf32> to vector<32x8xf32>
    %29 = arith.addf %25, %28 : vector<32x8xf32>
    %30 = vector.extract_strided_slice %17 {offsets = [24, 0], sizes = [8, 32], strides = [1, 1]} : vector<40x32xf32> to vector<8x32xf32>
    %31 = arith.addf %27, %30 : vector<8x32xf32>
    %32 = vector.extract_strided_slice %8 {offsets = [0, 32], sizes = [32, 8], strides = [1, 1]} : vector<32x40xf32> to vector<32x8xf32>
    %33 = arith.addf %29, %32 : vector<32x8xf32>
    %34 = vector.extract_strided_slice %17 {offsets = [32, 0], sizes = [8, 32], strides = [1, 1]} : vector<40x32xf32> to vector<8x32xf32>
    %35 = arith.addf %31, %34 : vector<8x32xf32>
    %36 = tpu.iota {dimensions = array<i32: 1>} : vector<32x8xi32>
    %c4_i32 = arith.constant 4 : i32
    %37 = vector.broadcast %c4_i32 : i32 to vector<32x8xi32>
    %38 = arith.cmpi slt, %36, %37 : vector<32x8xi32>
    %cst_14 = arith.constant 0.000000e+00 : f32
    %39 = vector.broadcast %cst_14 : f32 to vector<32x8xf32>
    %40 = arith.select %38, %33, %39 : vector<32x8xi1>, vector<32x8xf32>
    %41 = tpu.iota {dimensions = array<i32: 0>} : vector<8x32xi32>
    %c4_i32_15 = arith.constant 4 : i32
    %42 = vector.broadcast %c4_i32_15 : i32 to vector<8x32xi32>
    %43 = arith.cmpi slt, %41, %42 : vector<8x32xi32>
    %cst_16 = arith.constant 0.000000e+00 : f32
    %44 = vector.broadcast %cst_16 : f32 to vector<8x32xf32>
    %45 = arith.select %43, %35, %44 : vector<8x32xi1>, vector<8x32xf32>
    %46 = tpu.transpose %40, [1, 0] : vector<32x8xf32> -> vector<8x32xf32>
    %c0_17 = arith.constant 0 : index
    %c0_18 = arith.constant 0 : index
    %47 = vector.load %arg6[%c0_17, %c0_18] : memref<32x8xf32, #tpu.memory_space<vmem>>, vector<32x8xf32>
    tpu.vector_store %arg6[%c0_17, %c0_18], %40 {strides = array<i32>} : memref<32x8xf32, #tpu.memory_space<vmem>>, vector<32x8xf32>,
    %c0_19 = arith.constant 0 : index
    %c0_20 = arith.constant 0 : index
    %48 = vector.load %arg7[%c0_19, %c0_20] : memref<8x32xf32, #tpu.memory_space<vmem>>, vector<8x32xf32>
    tpu.vector_store %arg7[%c0_19, %c0_20], %46 {strides = array<i32>} : memref<8x32xf32, #tpu.memory_space<vmem>>, vector<8x32xf32>,
    %c0_21 = arith.constant 0 : index
    %c0_22 = arith.constant 0 : index
    %49 = vector.load %arg8[%c0_21, %c0_22] : memref<8x32xf32, #tpu.memory_space<vmem>>, vector<8x32xf32>
    tpu.vector_store %arg8[%c0_21, %c0_22], %45 {strides = array<i32>} : memref<8x32xf32, #tpu.memory_space<vmem>>, vector<8x32xf32>,
    %cst_23 = arith.constant dense<0.000000e+00> : vector<32xf32>
    %50 = vector.multi_reduction <add>, %46, %cst_23 [0] : vector<8x32xf32> to vector<32xf32>
    %51 = vector.shape_cast %50 : vector<32xf32> to vector<1x32xf32>
    %c0_24 = arith.constant 0 : index
    %c0_25 = arith.constant 0 : index
    %52 = vector.load %arg9[%c0_24, %c0_25] : memref<1x32xf32, #tpu.memory_space<vmem>>, vector<1x32xf32>
    tpu.vector_store %arg9[%c0_24, %c0_25], %51 {strides = array<i32>} : memref<1x32xf32, #tpu.memory_space<vmem>>, vector<1x32xf32>,
    return
  }
}

</mosaic_0001>

<llo_original>
// kernel: tpu_custom_call.1
$region0: #{tpu_custom_call.1}
  #allocation0 [shape = 'u32[]', space=smem, size = 0x4, offset = 0x4, fixed_abs, tag = 'smem constant byte address 0x4 - core index']
  #allocation1 [shape = 'u32[72,128]{1,0:T(1,128)}', space=vmem, size = 0x9000, scoped, tag = 'internal scratch']
  %s0 = inlined_call_operand.vmem [shape: f32[16,40], index: 0, kind: input, shape index: {}]
  %s1 = inlined_call_operand.vmem [shape: f32[40,8], index: 1, kind: input, shape index: {}]
  %s2 = inlined_call_operand.vmem [shape: f32[32,16], index: 2, kind: input, shape index: {}]
  %s3 = inlined_call_operand.vmem [shape: f32[32,1], index: 3, kind: input, shape index: {}]
  %s4 = inlined_call_operand.vmem [shape: f32[8,32], index: 4, kind: input, shape index: {}]
  %s5 = inlined_call_operand.vmem [shape: f32[1,32], index: 5, kind: input, shape index: {}]
  %s6 = inlined_call_operand.vmem [shape: f32[32,8], index: 6, kind: output, shape index: {0}]
  %s7 = inlined_call_operand.hbm [shape: f32[8,32], index: 7, kind: output, shape index: {1}]
  %s8 = inlined_call_operand.hbm [shape: f32[8,32], index: 8, kind: output, shape index: {2}]
  %s9 = inlined_call_operand.hbm [shape: f32[1,32], index: 9, kind: output, shape index: {3}]
  %10 = xla_tuple %s6, %s7, %s8, %s9
  %s11 = sld [smem:[#allocation0]]
  $region58: #{tpu_custom_call.1} parent=0
    _
  %s13 = ssub.s32 1, %s11
  %s14 = scalar_select 0, %s13, %s11
  $region1: #{tpu_custom_call.1} parent=0
    #allocation2 [shape = 'u8[4096]{0}', space=vmem, size = 0x1000, scoped, tag = 'output window, operand 1, single buffered']
    #allocation3 [shape = 's32[1]{0}', space=sflag, size = 0x4, scoped, tag = 'scoped memory for tpu_custom_call.1']
    #allocation4 [shape = 'u8[4096]{0}', space=vmem, size = 0x1000, scoped, tag = 'output window, operand 2, single buffered']
    #allocation5 [shape = 's32[1]{0}', space=sflag, size = 0x4, scoped, tag = 'scoped memory for tpu_custom_call.1']
    #allocation6 [shape = 'u8[512]{0}', space=vmem, size = 0x400, scoped, tag = 'output window, operand 3, single buffered']
    %15 = vsyncpa [#allocation3], 0
    %16 = vsyncpa [#allocation5], 0
    // Predicated region
    $region2: #{tpu_custom_call.1} parent=1 // pred_check
      _
    $region3: #{tpu_custom_call.1} parent=1 // pred_check_branch
      %18 = sbr.rel (0) target = $region5
    $region4: #{tpu_custom_call.1} parent=1 // pred_region
      _
    $region5: #{tpu_custom_call.1} parent=1 // pred_fallthru
      _
    // Predicated region
    $region6: #{tpu_custom_call.1} parent=1 // pred_check
      _
    $region7: #{tpu_custom_call.1} parent=1 // pred_check_branch
      %20 = sbr.rel (0) target = $region9
    $region8: #{tpu_custom_call.1} parent=1 // pred_region
      _
    $region9: #{tpu_custom_call.1} parent=1 // pred_fallthru
      _
    // Predicated region
    $region10: #{tpu_custom_call.1} parent=1 // pred_check
      _
    $region11: #{tpu_custom_call.1} parent=1 // pred_check_branch
      %22 = sbr.rel (0) target = $region13
    $region12: #{tpu_custom_call.1} parent=1 // pred_region
      _
    $region13: #{tpu_custom_call.1} parent=1 // pred_fallthru
      _
    // Predicated region
    $region14: #{tpu_custom_call.1} parent=1 // pred_check
      _
    $region15: #{tpu_custom_call.1} parent=1 // pred_check_branch
      %24 = sbr.rel (0) target = $region17
    $region16: #{tpu_custom_call.1} parent=1 // pred_region
      _
    $region17: #{tpu_custom_call.1} parent=1 // pred_fallthru
      _
    // Predicated region
    $region18: #{tpu_custom_call.1} parent=1 // pred_check
      _
    $region19: #{tpu_custom_call.1} parent=1 // pred_check_branch
      %26 = sbr.rel (0) target = $region21
    $region20: #{tpu_custom_call.1} parent=1 // pred_region
      _
    $region21: #{tpu_custom_call.1} parent=1 // pred_fallthru
      _
    // Predicated region
    $region22: #{tpu_custom_call.1} parent=1 // pred_check
      _
    $region23: #{tpu_custom_call.1} parent=1 // pred_check_branch
      %28 = sbr.rel (0) target = $region25
    $region24: #{tpu_custom_call.1} parent=1 // pred_region
      _
    $region25: #{tpu_custom_call.1} parent=1 // pred_fallthru
      _
    %v29 = vld [vmem:[%s2] sm:$0xff]
    %v30 = vld [vmem:[%s2 + $0x8] sm:$0xff]
    %v31 = vld [vmem:[%s2 + $0x10] sm:$0xff]
    %v32 = vld [vmem:[%s2 + $0x18] sm:$0xff]
    %v33 = vld [vmem:[%s0] sm:$0xff]
    %v34 = vld [vmem:[%s0 + $0x8] sm:$0xff]
    %v35 = vld [vmem:[%s3] sm:$0xff]
    %v36 = vld [vmem:[%s3 + $0x8] sm:$0xff]
    %v37 = vld [vmem:[%s3 + $0x10] sm:$0xff]
    %v38 = vld [vmem:[%s3 + $0x18] sm:$0xff]
    %40 = vset.pattern.permute.xlu0 0
    %41 = vperm.xlu0 %40, %v35
    %v42 = vpop.permute.xlu0 %41
    %45 = vset.pattern.permute.xlu0 0
    %46 = vperm.xlu0 %45, %v36
    %v47 = vpop.permute.xlu0 %46
    %50 = vset.pattern.permute.xlu0 0
    %51 = vperm.xlu0 %50, %v37
    %v52 = vpop.permute.xlu0 %51
    %55 = vset.pattern.permute.xlu0 0
    %56 = vperm.xlu0 %55, %v38
    %v57 = vpop.permute.xlu0 %56
    %vm59 = vcmask 130048
    %v61 = vsel %vm59, %v29, 0
    %v64 = vsel %vm59, %v30, 0
    %v67 = vsel %vm59, %v31, 0
    %v70 = vsel %vm59, %v32, 0
    %72 = vmatpush.msra.mxu0 0.0
    %73 = vmatpush.msra.mxu0 0.0
    %74 = vmatpush.msra.mxu0 0.0
    %75 = vmatpush.msra.mxu0 0.0
    %76 = vmatpush.msra.mxu0 0.0
    %77 = vmatpush.msra.mxu0 0.0
    %78 = vmatpush.msra.mxu0 0.0
    %79 = vmatpush.msra.mxu0 0.0
    %80 = vmatpush.msra.mxu0 0.0
    %81 = vmatpush.msra.mxu0 0.0
    %82 = vmatpush.msra.mxu0 0.0
    %83 = vmatpush.msra.mxu0 0.0
    %84 = vmatpush.msra.mxu0 0.0
    %85 = vmatpush.msra.mxu0 0.0
    %86 = vmatpush.msra.mxu0 %v34
    %87 = vmatpush.msra.mxu0 %v33
    %88 = vmatmul.f32.gmra.mxu0 %v61
    %v89 = vpop.f32.mrf.mxu0
    %v90 = vadd.f32 %v42, %v89
    %91 = vmatmul.f32.gmra.mxu0 %v64
    %v92 = vpop.f32.mrf.mxu0
    %v93 = vadd.f32 %v47, %v92
    %94 = vmatmul.f32.gmra.mxu0 %v67
    %v95 = vpop.f32.mrf.mxu0
    %v96 = vadd.f32 %v52, %v95
    %97 = vmatmul.f32.gmra.mxu0 %v70
    %v98 = vpop.f32.mrf.mxu0
    %v99 = vadd.f32 %v57, %v98
    %100 = vdwg.mxu0
    %v101 = vmul.f32 %v90, 0.01
    %v102 = vmul.f32 %v93, 0.01
    %v103 = vmul.f32 %v96, 0.01
    %v104 = vmul.f32 %v99, 0.01
    %v105 = vmax.f32 %v90, %v101
    %v106 = vmax.f32 %v93, %v102
    %v107 = vmax.f32 %v96, %v103
    %v108 = vmax.f32 %v99, %v104
    %v109 = vld [vmem:[%s1] sm:$0xff]
    %v110 = vld [vmem:[%s1 + $0x8] sm:$0xff]
    %v111 = vld [vmem:[%s1 + $0x10] sm:$0xff]
    %v112 = vld [vmem:[%s1 + $0x18] sm:$0xff]
    %v113 = vld [vmem:[%s1 + $0x20] sm:$0xff]
    %v114 = vld [vmem:[%s4] sm:$0xff]
    %v115 = vld [vmem:[%s5] sm:$0x1]
    %v117 = vperm.slane %v115, 0
    %vm119 = vcmask 64512
    %v121 = vsel %vm119, %v109, 0
    %v124 = vsel %vm119, %v110, 0
    %v127 = vsel %vm119, %v111, 0
    %v130 = vsel %vm119, %v112, 0
    %v133 = vsel %vm119, %v113, 0
    %135 = vmatpush.msra.mxu0 0.0
    %136 = vmatpush.msra.mxu0 0.0
    %137 = vmatpush.msra.mxu0 0.0
    %138 = vmatpush.msra.mxu0 0.0
    %139 = vmatpush.msra.mxu0 0.0
    %140 = vmatpush.msra.mxu0 0.0
    %141 = vmatpush.msra.mxu0 0.0
    %142 = vmatpush.msra.mxu0 0.0
    %143 = vmatpush.msra.mxu0 0.0
    %144 = vmatpush.msra.mxu0 0.0
    %145 = vmatpush.msra.mxu0 0.0
    %146 = vmatpush.msra.mxu0 0.0
    %147 = vmatpush.msra.mxu0 0.0
    %148 = vmatpush.msra.mxu0 0.0
    %149 = vmatpush.msra.mxu0 0.0
    %150 = vmatpush.msra.mxu0 %v114
    %151 = vmatmul.f32.gmra.mxu0 %v121
    %v152 = vpop.f32.mrf.mxu0
    %v153 = vadd.f32 %v117, %v152
    %154 = vmatmul.f32.gmra.mxu0 %v124
    %v155 = vpop.f32.mrf.mxu0
    %v156 = vadd.f32 %v117, %v155
    %157 = vmatmul.f32.gmra.mxu0 %v127
    %v158 = vpop.f32.mrf.mxu0
    %v159 = vadd.f32 %v117, %v158
    %160 = vmatmul.f32.gmra.mxu0 %v130
    %v161 = vpop.f32.mrf.mxu0
    %v162 = vadd.f32 %v117, %v161
    %163 = vmatmul.f32.gmra.mxu0 %v133
    %v164 = vpop.f32.mrf.mxu0
    %v165 = vadd.f32 %v117, %v164
    %166 = vdwg.mxu0
    %v167 = vmul.f32 %v153, 0.01
    %v168 = vmul.f32 %v156, 0.01
    %v169 = vmul.f32 %v159, 0.01
    %v170 = vmul.f32 %v162, 0.01
    %v171 = vmul.f32 %v165, 0.01
    %v172 = vmax.f32 %v153, %v167
    %v173 = vmax.f32 %v156, %v168
    %v174 = vmax.f32 %v159, %v169
    %v175 = vmax.f32 %v162, %v170
    %v176 = vmax.f32 %v165, %v171
    %181 = vrot.lane.b32.xlu0 %v105, 120
    %v182 = vpop.permute.xlu0 %181
    %183 = vrot.lane.b32.xlu0 %v106, 120
    %v184 = vpop.permute.xlu0 %183
    %185 = vrot.lane.b32.xlu0 %v107, 120
    %v186 = vpop.permute.xlu0 %185
    %187 = vrot.lane.b32.xlu0 %v108, 120
    %v188 = vpop.permute.xlu0 %187
    %v193 = vadd.f32 %v105, %v182
    %v194 = vadd.f32 %v106, %v184
    %v195 = vadd.f32 %v107, %v186
    %v196 = vadd.f32 %v108, %v188
    %v197 = vadd.f32 %v172, %v173
    %198 = vrot.lane.b32.xlu0 %v105, 112
    %v199 = vpop.permute.xlu0 %198
    %200 = vrot.lane.b32.xlu0 %v106, 112
    %v201 = vpop.permute.xlu0 %200
    %202 = vrot.lane.b32.xlu0 %v107, 112
    %v203 = vpop.permute.xlu0 %202
    %204 = vrot.lane.b32.xlu0 %v108, 112
    %v205 = vpop.permute.xlu0 %204
    %v210 = vadd.f32 %v193, %v199
    %v211 = vadd.f32 %v194, %v201
    %v212 = vadd.f32 %v195, %v203
    %v213 = vadd.f32 %v196, %v205
    %v214 = vadd.f32 %v197, %v174
    %215 = vrot.lane.b32.xlu0 %v105, 104
    %v216 = vpop.permute.xlu0 %215
    %217 = vrot.lane.b32.xlu0 %v106, 104
    %v218 = vpop.permute.xlu0 %217
    %219 = vrot.lane.b32.xlu0 %v107, 104
    %v220 = vpop.permute.xlu0 %219
    %221 = vrot.lane.b32.xlu0 %v108, 104
    %v222 = vpop.permute.xlu0 %221
    %v227 = vadd.f32 %v210, %v216
    %v228 = vadd.f32 %v211, %v218
    %v229 = vadd.f32 %v212, %v220
    %v230 = vadd.f32 %v213, %v222
    %v231 = vadd.f32 %v214, %v175
    %232 = vrot.lane.b32.xlu0 %v105, 96
    %v233 = vpop.permute.xlu0 %232
    %234 = vrot.lane.b32.xlu0 %v106, 96
    %v235 = vpop.permute.xlu0 %234
    %236 = vrot.lane.b32.xlu0 %v107, 96
    %v237 = vpop.permute.xlu0 %236
    %238 = vrot.lane.b32.xlu0 %v108, 96
    %v239 = vpop.permute.xlu0 %238
    %v244 = vadd.f32 %v227, %v233
    %v245 = vadd.f32 %v228, %v235
    %v246 = vadd.f32 %v229, %v237
    %v247 = vadd.f32 %v230, %v239
    %v248 = vadd.f32 %v231, %v176
    %v249 = vlaneseq
    %v250 = vand.u32 %v249, 127
    %vm251 = vcmp.lt.s32.totalorder %v250, 4
    %v252 = vsel %vm251, %v244, 0.0
    %v253 = vsel %vm251, %v245, 0.0
    %v254 = vsel %vm251, %v246, 0.0
    %v255 = vsel %vm251, %v247, 0.0
    %v256 = vlaneseq
    %v257 = vshrl.u32 %v256, 7
    %vm258 = vcmp.lt.s32.totalorder %v257, 4
    %v259 = vsel %vm258, %v248, 0.0
    %260 = vxpose.xlu0.b32.start [1/16] %v252, 128
    %261 = vxpose.xlu0.b32.cont [2/16] %v253, 128
    %262 = vxpose.xlu0.b32.cont [3/16] %v254, 128
    %263 = vxpose.xlu0.b32.cont [4/16] %v255, 128
    %264 = vxpose.xlu0.b32.cont [5/16] 0.0, 128
    %265 = vxpose.xlu0.b32.cont [6/16] 0.0, 128
    %266 = vxpose.xlu0.b32.cont [7/16] 0.0, 128
    %267 = vxpose.xlu0.b32.cont [8/16] 0.0, 128
    %268 = vxpose.xlu0.b32.cont [9/16] 0.0, 128
    %269 = vxpose.xlu0.b32.cont [10/16] 0.0, 128
    %270 = vxpose.xlu0.b32.cont [11/16] 0.0, 128
    %271 = vxpose.xlu0.b32.cont [12/16] 0.0, 128
    %272 = vxpose.xlu0.b32.cont [13/16] 0.0, 128
    %273 = vxpose.xlu0.b32.cont [14/16] 0.0, 128
    %274 = vxpose.xlu0.b32.cont [15/16] 0.0, 128
    %275 = vxpose.xlu0.b32.end [16/16] 0.0, 128
    %v276 = vpop.trf.xlu0
    %v277 = vpop.trf.xlu0
    %v278 = vpop.trf.xlu0
    %v279 = vpop.trf.xlu0
    %v280 = vpop.trf.xlu0
    %v281 = vpop.trf.xlu0
    %v282 = vpop.trf.xlu0
    %v283 = vpop.trf.xlu0
    %v284 = vpop.trf.xlu0
    %v285 = vpop.trf.xlu0
    %v286 = vpop.trf.xlu0
    %v287 = vpop.trf.xlu0
    %v288 = vpop.trf.xlu0
    %v289 = vpop.trf.xlu0
    %v290 = vpop.trf.xlu0
    %v291 = vpop.trf.xlu0
    %292 = vst.msk [vmem:[%s6] sm:$0xff] %vm119, %v252
    %293 = vst.msk [vmem:[%s6 + $0x8] sm:$0xff] %vm119, %v253
    %294 = vst.msk [vmem:[%s6 + $0x10] sm:$0xff] %vm119, %v254
    %295 = vst.msk [vmem:[%s6 + $0x18] sm:$0xff] %vm119, %v255
    %vm296 = vcmask 261120
    %297 = vst.msk [vmem:[#allocation2] sm:$0xff] %vm296, %v276
    %298 = vst.msk [vmem:[#allocation4] sm:$0xff] %vm296, %v259
    %v299 = vsel %vm296, %v276, 0.0
    %v300 = vrot.slane %v299, 4
    %v301 = vadd.f32 %v299, %v300
    %v302 = vrot.slane %v301, 2
    %v303 = vadd.f32 %v301, %v302
    %v304 = vrot.slane %v303, 1
    %v305 = vadd.f32 %v303, %v304
    %vm306 = vcmask 253952
    %307 = vst.msk [vmem:[#allocation6] sm:$0x1] %vm306, %v305
    // Predicated region
    $region26: #{tpu_custom_call.1} parent=1 // pred_check
      _
    $region27: #{tpu_custom_call.1} parent=1 // pred_check_branch
      %309 = sbr.rel (0) target = $region29
    $region28: #{tpu_custom_call.1} parent=1 // pred_region
      _
    $region29: #{tpu_custom_call.1} parent=1 // pred_fallthru
      _
    // Predicated region
    $region30: #{tpu_custom_call.1} parent=1 // pred_check
      _
    $region31: #{tpu_custom_call.1} parent=1 // pred_check_branch
      %311 = sbr.rel (0) target = $region33
    $region32: #{tpu_custom_call.1} parent=1 // pred_region
      %313 = vsyncadd [#allocation3], 0
      %s315 = sshll.u32 [#allocation2], 4
      %s316 = int_to_ptr.vmem [resolvable:$true] %s315
      %s317 = sshll.u32 %s7, 4
      %s318 = int_to_ptr.hbm [resolvable:$true] %s317
      %320 = dma.vmem_to_hbm [thread:$0]  %s316, 128, %s318, [#allocation3]
    $region33: #{tpu_custom_call.1} parent=1 // pred_fallthru
      _
    // Predicated region
    $region34: #{tpu_custom_call.1} parent=1 // pred_check
      _
    $region35: #{tpu_custom_call.1} parent=1 // pred_check_branch
      %322 = sbr.rel (0) target = $region37
    $region36: #{tpu_custom_call.1} parent=1 // pred_region
      %324 = vsyncadd [#allocation5], 0
      %s326 = sshll.u32 [#allocation4], 4
      %s327 = int_to_ptr.vmem [resolvable:$true] %s326
      %s328 = sshll.u32 %s8, 4
      %s329 = int_to_ptr.hbm [resolvable:$true] %s328
      %331 = dma.vmem_to_hbm [thread:$0]  %s327, 128, %s329, [#allocation5]
    $region37: #{tpu_custom_call.1} parent=1 // pred_fallthru
      _
    // Predicated region
    $region38: #{tpu_custom_call.1} parent=1 // pred_check
      _
    $region39: #{tpu_custom_call.1} parent=1 // pred_check_branch
      %333 = sbr.rel (0) target = $region41
    $region40: #{tpu_custom_call.1} parent=1 // pred_region
      %335 = vsyncadd [#allocation5], 0
      %s337 = sshll.u32 [#allocation6], 4
      %s338 = int_to_ptr.vmem [resolvable:$true] %s337
      %s339 = sshll.u32 %s9, 4
      %s340 = int_to_ptr.hbm [resolvable:$true] %s339
      %342 = dma.vmem_to_hbm [thread:$0]  %s338, 16, %s340, [#allocation5]
    $region41: #{tpu_custom_call.1} parent=1 // pred_fallthru
      _
    // Predicated region
    $region42: #{tpu_custom_call.1} parent=1 // pred_check
      _
    $region43: #{tpu_custom_call.1} parent=1 // pred_check_branch
      %344 = sbr.rel (0) target = $region45
    $region44: #{tpu_custom_call.1} parent=1 // pred_region
      _
    $region45: #{tpu_custom_call.1} parent=1 // pred_fallthru
      _
    // Predicated region
    $region46: #{tpu_custom_call.1} parent=1 // pred_check
      _
    $region47: #{tpu_custom_call.1} parent=1 // pred_check_branch
      %346 = sbr.rel (0) target = $region49
    $region48: #{tpu_custom_call.1} parent=1 // pred_region
      %348 = dma.done [#allocation3], 128
    $region49: #{tpu_custom_call.1} parent=1 // pred_fallthru
      _
    // Predicated region
    $region50: #{tpu_custom_call.1} parent=1 // pred_check
      _
    $region51: #{tpu_custom_call.1} parent=1 // pred_check_branch
      %350 = sbr.rel (0) target = $region53
    $region52: #{tpu_custom_call.1} parent=1 // pred_region
      %352 = dma.done [#allocation5], 128
    $region53: #{tpu_custom_call.1} parent=1 // pred_fallthru
      _
    // Predicated region
    $region54: #{tpu_custom_call.1} parent=1 // pred_check
      _
    $region55: #{tpu_custom_call.1} parent=1 // pred_check_branch
      %354 = sbr.rel (0) target = $region57
    $region56: #{tpu_custom_call.1} parent=1 // pred_region
      %356 = dma.done [#allocation5], 16
    $region57: #{tpu_custom_call.1} parent=1 // pred_fallthru
      _
    %357 = vsyncpa [#allocation3], 1
    %358 = vsyncpa [#allocation5], 1

</llo_original>
